<compile_context>
chip_gen: v5e
topology: v5e:2x2
jax: 0.10.0
libtpu: 0.0.40
codegen_flags: <defaults>
</compile_context>

<pallas_src>
import math
import functools

import jax
import jax.numpy as jnp
from jax import lax
from jax.experimental import pallas as pl
from jax.experimental.pallas import tpu as pltpu

# ---- small, deterministic config --------------------------------------------
BATCH = 2
SEQ = 8
NUM_HEADS = 4
HEAD_DIM = 8
HIDDEN = NUM_HEADS * HEAD_DIM          # 32
QKV_OUT = 3 * HIDDEN                   # 96 (3 * hidden_size; standard MHA path)
ROPE_THETA = 10000.0

# dot_general dimension_numbers contracting the LAST dim of both operands:
# computes x @ W.T without materializing W.T anywhere.
_DN_T = (((1,), (1,)), ((), ()))


# ---- fused Pallas kernel -----------------------------------------------------
def _falcon_attn_kernel(x_ref, wqkv_ref, wdense_ref, cos_sin_ref,
                        head_mask_ref, score_mask_ref, o_ref,
                        *, num_heads, hidden):
    x = x_ref[...]                    # (B*S, HIDDEN)       lane-dense activations
    w_packed = wqkv_ref[...]          # (5*HIDDEN, HIDDEN)  rows [Q|K|V|Qrot|Krot]
    w_dense = wdense_ref[...]         # (HIDDEN, HIDDEN)
    cos = cos_sin_ref[0]              # (B*S, HIDDEN)       rotary cos, head-tiled
    sin = cos_sin_ref[1]              # (B*S, HIDDEN)
    head_mask = head_mask_ref[...]    # (H*B*S, HIDDEN)     1.0 on head h's lanes in block h
    score_mask = score_mask_ref[...]  # (H*B*S, B*S)        0 same-batch / -1e30 cross-batch

    bs = x.shape[0]

    # (1) Fused projection: one MXU op emits q, k, v and rotate_half(q/k)
    #     (rotate_half = signed output-row permutation folded into the weight;
    #     the 1/sqrt(head_dim) query scale is folded into the Q rows too).
    proj = lax.dot_general(x, w_packed, _DN_T,
                           preferred_element_type=jnp.float32)      # (B*S, 5*HIDDEN)
    q = proj[:, 0 * hidden:1 * hidden]
    k = proj[:, 1 * hidden:2 * hidden]
    v = proj[:, 2 * hidden:3 * hidden]
    q_rot = proj[:, 3 * hidden:4 * hidden]
    k_rot = proj[:, 4 * hidden:5 * hidden]

    # (2) Lane-dense GPT-NeoX RoPE: x*cos + rotate_half(x)*sin as two FMAs over
    #     the full (B*S, HIDDEN) tiles -- zero rolls, zero per-head slices.
    q = q * cos + q_rot * sin
    k = k * cos + k_rot * sin

    # (3) All (batch, head) attention in two MXU ops + one softmax.
    #     Queries are stacked along sublanes once per head and masked to that
    #     head's lanes, so contracting against k over the full HIDDEN axis
    #     yields exactly that head's scores (other heads' lanes contribute 0).
    q_stack = jnp.concatenate([q] * num_heads, axis=0) * head_mask  # (H*B*S, HIDDEN)
    s = lax.dot_general(q_stack, k, _DN_T,
                        preferred_element_type=jnp.float32)         # (H*B*S, B*S)
    s = s + score_mask                 # keep batches separate (block-diagonal)
    m = jnp.max(s, axis=-1, keepdims=True)
    e = jnp.exp(s - m)
    l = jnp.sum(e, axis=-1, keepdims=True)
    # NOTE: pl.reciprocal(l, approx=True) would move this onto the EUP vrcp
    # slot; at (H*B*S, 1) the saving is nil and the exact divide keeps tight
    # numerical parity with the reference in both compiled and interpret modes.
    p = e / l
    o_stack = jnp.dot(p, v, preferred_element_type=jnp.float32)     # (H*B*S, HIDDEN)

    # (4) Head merge: zero lanes owned by other heads and collapse the H
    #     sublane blocks -- equivalent to the reference permute+reshape merge.
    o_stack = o_stack * head_mask
    attn = o_stack[0:bs]
    for h in range(1, num_heads):
        attn = attn + o_stack[h * bs:(h + 1) * bs]                  # (B*S, HIDDEN)

    # (5) Dense projection (FalconLinear, bias=False): attn @ W_dense.T
    o_ref[...] = lax.dot_general(attn, w_dense, _DN_T,
                                 preferred_element_type=jnp.float32
                                 ).astype(o_ref.dtype)


def _fused_attention_call(x_flat, w_packed, w_dense, cos_sin, head_mask,
                          score_mask):
    """Single-shot pallas_call: whole FalconAttention forward, no grid."""
    bs, hidden = x_flat.shape
    kern = functools.partial(_falcon_attn_kernel,
                             num_heads=NUM_HEADS, hidden=HIDDEN)
    vmem = pl.BlockSpec(memory_space=pltpu.MemorySpace.VMEM)   # whole array in VMEM
    return pl.pallas_call(
        kern,
        out_shape=jax.ShapeDtypeStruct((bs, hidden), jnp.float32),
        in_specs=[vmem] * 6,
        out_specs=vmem,
    )(x_flat, w_packed, w_dense, cos_sin, head_mask, score_mask)


@jax.jit
def falcon_attention_forward(hidden_states, w_packed, w_dense, cos_sin,
                             head_mask, score_mask):
    B, S, Hd = hidden_states.shape
    out_flat = _fused_attention_call(hidden_states.reshape(B * S, Hd),
                                     w_packed, w_dense, cos_sin,
                                     head_mask, score_mask)
    return out_flat.reshape(B, S, Hd)


# ---- one-time, "model load" precompute (hoisted out of the jitted forward) ---
def precompute_falcon_attention_constants(w_qkv, position_ids):
    """Returns:
      w_packed:   (5*HIDDEN, HIDDEN) rows [Q|K|V|rotate_half(Q)|rotate_half(K)],
                  head-major (row h*D+d), 1/sqrt(D) query scale folded in.
      cos_sin:    (2, B*S, HIDDEN) rotary tables tiled across heads.
      head_mask:  (H*B*S, HIDDEN) 1.0 where lane c belongs to head h of block h.
      score_mask: (H*B*S, B*S) additive mask: 0 same-batch, -1e30 cross-batch.
    """
    B, S = position_ids.shape
    bs = B * S
    half = HEAD_DIM // 2
    inv_norm = 1.0 / math.sqrt(HEAD_DIM)

    # fused QKV weight with rotate_half folded in as extra (signed, permuted) rows
    w_r = w_qkv.reshape(NUM_HEADS, 3, HEAD_DIM, HIDDEN)     # Falcon (h, {q,k,v}, d, in)
    wq, wk, wv = w_r[:, 0], w_r[:, 1], w_r[:, 2]            # (H, D, HIDDEN) each

    def rot(w):  # rotate_half = signed permutation of the projection's output rows
        return jnp.concatenate([-w[:, half:, :], w[:, :half, :]], axis=1)

    w_packed = jnp.concatenate([
        (wq * inv_norm).reshape(HIDDEN, HIDDEN),
        wk.reshape(HIDDEN, HIDDEN),
        wv.reshape(HIDDEN, HIDDEN),
        (rot(wq) * inv_norm).reshape(HIDDEN, HIDDEN),
        rot(wk).reshape(HIDDEN, HIDDEN),
    ], axis=0)                                              # (5*HIDDEN, HIDDEN)

    # GPT-NeoX rotary tables (past_kv_length = 0), tiled over heads, flat over (B,S)
    inv_freq = 1.0 / (ROPE_THETA ** (jnp.arange(0, HEAD_DIM, 2,
                                                dtype=jnp.float32) / HEAD_DIM))
    t = jnp.arange(int(position_ids.max()) + 1, dtype=jnp.float32)
    freqs = jnp.einsum('i,j->ij', t, inv_freq)
    emb = jnp.concatenate([freqs, freqs], axis=-1)          # (T, D)
    cos = jnp.tile(jnp.cos(emb)[position_ids], (1, 1, NUM_HEADS)).reshape(bs, HIDDEN)
    sin = jnp.tile(jnp.sin(emb)[position_ids], (1, 1, NUM_HEADS)).reshape(bs, HIDDEN)
    cos_sin = jnp.stack([cos, sin], axis=0)                 # (2, B*S, HIDDEN)

    # masks
    head_of_row = jnp.repeat(jnp.arange(NUM_HEADS), bs)     # (H*B*S,)
    head_of_lane = jnp.arange(HIDDEN) // HEAD_DIM           # (HIDDEN,)
    head_mask = (head_of_row[:, None] == head_of_lane[None, :]).astype(jnp.float32)

    batch_of_row = jnp.tile(jnp.arange(bs) // S, (NUM_HEADS,))   # (H*B*S,)
    batch_of_col = jnp.arange(bs) // S                           # (B*S,)
    score_mask = jnp.where(batch_of_row[:, None] == batch_of_col[None, :],
                           0.0, -1e30).astype(jnp.float32)

    return w_packed, cos_sin, head_mask, score_mask


# ---- pure-JAX reference for verification ------------------------------------
def _rotate_half_ref(x):
    half = x.shape[-1] // 2
    return jnp.concatenate([-x[..., half:], x[..., :half]], axis=-1)


def falcon_attention_reference(hidden_states, w_qkv, w_dense, position_ids):
    B, S, _ = hidden_states.shape
    fused = (hidden_states @ w_qkv.T).reshape(B, S, NUM_HEADS, 3, HEAD_DIM)
    q = fused[..., 0, :].transpose(0, 2, 1, 3)              # (B, H, S, D)
    k = fused[..., 1, :].transpose(0, 2, 1, 3)
    v = fused[..., 2, :].transpose(0, 2, 1, 3)

    inv_freq = 1.0 / (ROPE_THETA ** (jnp.arange(0, HEAD_DIM, 2,
                                                dtype=jnp.float32) / HEAD_DIM))
    t = jnp.arange(S, dtype=jnp.float32)
    freqs = jnp.einsum('i,j->ij', t, inv_freq)
    emb = jnp.concatenate([freqs, freqs], axis=-1)
    cos = jnp.cos(emb)[position_ids][:, None]               # (B, 1, S, D)
    sin = jnp.sin(emb)[position_ids][:, None]

    q = q * cos + _rotate_half_ref(q) * sin
    k = k * cos + _rotate_half_ref(k) * sin

    scores = jnp.einsum('bhqd,bhkd->bhqk', q, k) / math.sqrt(HEAD_DIM)
    p = jax.nn.softmax(scores, axis=-1)
    o = jnp.einsum('bhqk,bhkd->bhqd', p, v)
    o = o.transpose(0, 2, 1, 3).reshape(B, S, HIDDEN)
    return o @ w_dense.T


if __name__ == "__main__":
    key = jax.random.PRNGKey(0)
    k0, k1, k2 = jax.random.split(key, 3)

    hidden_states = jax.random.normal(k0, (BATCH, SEQ, HIDDEN), dtype=jnp.float32)
    w_qkv = jax.random.normal(k1, (QKV_OUT, HIDDEN), dtype=jnp.float32) * 0.05
    w_dense = jax.random.normal(k2, (HIDDEN, HIDDEN), dtype=jnp.float32) * 0.05
    position_ids = jnp.broadcast_to(jnp.arange(SEQ), (BATCH, SEQ))

    # one-time load-time precompute (hoisted out of the per-call jit, per review)
    w_packed, cos_sin, head_mask, score_mask = precompute_falcon_attention_constants(
        w_qkv, position_ids)

    out = falcon_attention_forward(hidden_states, w_packed, w_dense,
                                   cos_sin, head_mask, score_mask)
    out = jax.block_until_ready(out)

    ref = falcon_attention_reference(hidden_states, w_qkv, w_dense, position_ids)
    assert out.shape == (BATCH, SEQ, HIDDEN)
    max_diff = float(jnp.max(jnp.abs(out - ref)))
    assert jnp.allclose(out, ref, atol=1e-4, rtol=1e-4), f"max abs diff {max_diff}"

    # TODO(synk): KV-cache update (self.layer_past = present) is module state and
    # is not modeled here (layer_past=None prefill path only; dropout inactive).
    print("KERNEL_OK")
</pallas_src>

<mosaic_0001>
module attributes {stable_mosaic.version = 11 : i64} {
  func.func @_falcon_attn_kernel(%arg0: memref<16x32xf32, #tpu.memory_space<vmem>>, %arg1: memref<160x32xf32, #tpu.memory_space<vmem>>, %arg2: memref<32x32xf32, #tpu.memory_space<vmem>>, %arg3: memref<2x16x32xf32, #tpu.memory_space<vmem>>, %arg4: memref<64x32xf32, #tpu.memory_space<vmem>>, %arg5: memref<64x16xf32, #tpu.memory_space<vmem>>, %arg6: memref<16x32xf32, #tpu.memory_space<vmem>>) attributes {dimension_semantics = [], scalar_prefetch = 0 : i64, scratch_operands = 0 : i64, tpu.core_type = #tpu.core_type<tc>} {
    %c0 = arith.constant 0 : index
    %c0_0 = arith.constant 0 : index
    %0 = vector.load %arg0[%c0, %c0_0] : memref<16x32xf32, #tpu.memory_space<vmem>>, vector<16x32xf32>
    %c0_1 = arith.constant 0 : index
    %c0_2 = arith.constant 0 : index
    %1 = vector.load %arg1[%c0_1, %c0_2] : memref<160x32xf32, #tpu.memory_space<vmem>>, vector<160x32xf32>
    %c0_3 = arith.constant 0 : index
    %c0_4 = arith.constant 0 : index
    %2 = vector.load %arg2[%c0_3, %c0_4] : memref<32x32xf32, #tpu.memory_space<vmem>>, vector<32x32xf32>
    %c0_5 = arith.constant 0 : index
    %c0_6 = arith.constant 0 : index
    %c0_7 = arith.constant 0 : index
    %3 = vector.load %arg3[%c0_5, %c0_6, %c0_7] : memref<2x16x32xf32, #tpu.memory_space<vmem>>, vector<1x16x32xf32>
    %4 = vector.shape_cast %3 : vector<1x16x32xf32> to vector<16x32xf32>
    %c1 = arith.constant 1 : index
    %c0_8 = arith.constant 0 : index
    %c0_9 = arith.constant 0 : index
    %5 = vector.load %arg3[%c1, %c0_8, %c0_9] : memref<2x16x32xf32, #tpu.memory_space<vmem>>, vector<1x16x32xf32>
    %6 = vector.shape_cast %5 : vector<1x16x32xf32> to vector<16x32xf32>
    %c0_10 = arith.constant 0 : index
    %c0_11 = arith.constant 0 : index
    %7 = vector.load %arg4[%c0_10, %c0_11] : memref<64x32xf32, #tpu.memory_space<vmem>>, vector<64x32xf32>
    %c0_12 = arith.constant 0 : index
    %c0_13 = arith.constant 0 : index
    %8 = vector.load %arg5[%c0_12, %c0_13] : memref<64x16xf32, #tpu.memory_space<vmem>>, vector<64x16xf32>
    %cst = arith.constant dense<0.000000e+00> : vector<16x160xf32>
    %9 = tpu.matmul %0, %1, %cst {dimension_numbers = #tpu.dot_dimension_numbers<[1], [1], [0], [0], [0, 0, 1, 0], [], []>} : vector<16x32xf32>, vector<160x32xf32>, vector<16x160xf32> -> vector<16x160xf32>
    %10 = vector.extract_strided_slice %9 {offsets = [0, 0], sizes = [16, 32], strides = [1, 1]} : vector<16x160xf32> to vector<16x32xf32>
    %11 = vector.extract_strided_slice %9 {offsets = [0, 32], sizes = [16, 32], strides = [1, 1]} : vector<16x160xf32> to vector<16x32xf32>
    %12 = vector.extract_strided_slice %9 {offsets = [0, 64], sizes = [16, 32], strides = [1, 1]} : vector<16x160xf32> to vector<16x32xf32>
    %13 = vector.extract_strided_slice %9 {offsets = [0, 96], sizes = [16, 32], strides = [1, 1]} : vector<16x160xf32> to vector<16x32xf32>
    %14 = vector.extract_strided_slice %9 {offsets = [0, 128], sizes = [16, 32], strides = [1, 1]} : vector<16x160xf32> to vector<16x32xf32>
    %15 = arith.mulf %10, %4 : vector<16x32xf32>
    %16 = arith.mulf %13, %6 : vector<16x32xf32>
    %17 = arith.addf %15, %16 : vector<16x32xf32>
    %18 = arith.mulf %11, %4 : vector<16x32xf32>
    %19 = arith.mulf %14, %6 : vector<16x32xf32>
    %20 = arith.addf %18, %19 : vector<16x32xf32>
    %21 = tpu.concatenate %17, %17, %17, %17 in 0 : vector<16x32xf32>, vector<16x32xf32>, vector<16x32xf32>, vector<16x32xf32> -> vector<64x32xf32>
    %22 = arith.mulf %21, %7 : vector<64x32xf32>
    %cst_14 = arith.constant dense<0.000000e+00> : vector<64x16xf32>
    %23 = tpu.matmul %22, %20, %cst_14 {dimension_numbers = #tpu.dot_dimension_numbers<[1], [1], [0], [0], [0, 0, 1, 0], [], []>} : vector<64x32xf32>, vector<16x32xf32>, vector<64x16xf32> -> vector<64x16xf32>
    %24 = arith.addf %23, %8 : vector<64x16xf32>
    %cst_15 = arith.constant dense<0xFF800000> : vector<64xf32>
    %25 = vector.multi_reduction <maximumf>, %24, %cst_15 [1] : vector<64x16xf32> to vector<64xf32>
    %26 = vector.shape_cast %25 : vector<64xf32> to vector<64x1xf32>
    %27 = vector.broadcast %26 : vector<64x1xf32> to vector<64x16xf32>
    %28 = arith.subf %24, %27 : vector<64x16xf32>
    %29 = math.exp %28 : vector<64x16xf32>
    %cst_16 = arith.constant dense<0.000000e+00> : vector<64xf32>
    %30 = vector.multi_reduction <add>, %29, %cst_16 [1] : vector<64x16xf32> to vector<64xf32>
    %31 = vector.shape_cast %30 : vector<64xf32> to vector<64x1xf32>
    %32 = vector.broadcast %31 : vector<64x1xf32> to vector<64x16xf32>
    %33 = arith.divf %29, %32 : vector<64x16xf32>
    %cst_17 = arith.constant dense<0.000000e+00> : vector<64x32xf32>
    %34 = tpu.matmul %33, %12, %cst_17 {dimension_numbers = #tpu.dot_dimension_numbers<[1], [0], [0], [1], [0, 0, 1, 1], [], []>} : vector<64x16xf32>, vector<16x32xf32>, vector<64x32xf32> -> vector<64x32xf32>
    %35 = arith.mulf %34, %7 : vector<64x32xf32>
    %36 = vector.extract_strided_slice %35 {offsets = [0, 0], sizes = [16, 32], strides = [1, 1]} : vector<64x32xf32> to vector<16x32xf32>
    %37 = vector.extract_strided_slice %35 {offsets = [16, 0], sizes = [16, 32], strides = [1, 1]} : vector<64x32xf32> to vector<16x32xf32>
    %38 = arith.addf %36, %37 : vector<16x32xf32>
    %39 = vector.extract_strided_slice %35 {offsets = [32, 0], sizes = [16, 32], strides = [1, 1]} : vector<64x32xf32> to vector<16x32xf32>
    %40 = arith.addf %38, %39 : vector<16x32xf32>
    %41 = vector.extract_strided_slice %35 {offsets = [48, 0], sizes = [16, 32], strides = [1, 1]} : vector<64x32xf32> to vector<16x32xf32>
    %42 = arith.addf %40, %41 : vector<16x32xf32>
    %cst_18 = arith.constant dense<0.000000e+00> : vector<16x32xf32>
    %43 = tpu.matmul %42, %2, %cst_18 {dimension_numbers = #tpu.dot_dimension_numbers<[1], [1], [0], [0], [0, 0, 1, 0], [], []>} : vector<16x32xf32>, vector<32x32xf32>, vector<16x32xf32> -> vector<16x32xf32>
    %c0_19 = arith.constant 0 : index
    %c0_20 = arith.constant 0 : index
    %44 = vector.load %arg6[%c0_19, %c0_20] : memref<16x32xf32, #tpu.memory_space<vmem>>, vector<16x32xf32>
    tpu.vector_store %arg6[%c0_19, %c0_20], %43 {strides = array<i32>} : memref<16x32xf32, #tpu.memory_space<vmem>>, vector<16x32xf32>,
    return
  }
}

</mosaic_0001>

<llo_original>
// kernel: falcon_attention_forward.1
$region0: #{falcon_attention_forward.1}
  #allocation0 [shape = 'u32[]', space=smem, size = 0x4, offset = 0x4, fixed_abs, tag = 'smem constant byte address 0x4 - core index']
  #allocation1 [shape = 'u32[72,128]{1,0:T(1,128)}', space=vmem, size = 0x9000, scoped, tag = 'internal scratch']
  %s0 = inlined_call_operand.vmem [shape: f32[16,32], index: 0, kind: input, shape index: {}]
  %s1 = inlined_call_operand.vmem [shape: f32[160,32], index: 1, kind: input, shape index: {}]
  %s2 = inlined_call_operand.vmem [shape: f32[32,32], index: 2, kind: input, shape index: {}]
  %s3 = inlined_call_operand.vmem [shape: f32[2,16,32], index: 3, kind: input, shape index: {}]
  %s4 = inlined_call_operand.vmem [shape: f32[64,32], index: 4, kind: input, shape index: {}]
  %s5 = inlined_call_operand.vmem [shape: f32[64,16], index: 5, kind: input, shape index: {}]
  %s6 = inlined_call_operand.hbm [shape: f32[16,32], index: 6, kind: output, shape index: {}]
  %s7 = sld [smem:[#allocation0]]
  $region34: #{falcon_attention_forward.1} parent=0
    _
  %s9 = ssub.s32 1, %s7
  %s10 = scalar_select 0, %s9, %s7
  $region1: #{falcon_attention_forward.1} parent=0
    #allocation2 [shape = 'u8[8192]{0}', space=vmem, size = 0x2000, scoped, tag = 'output window, operand 0, single buffered']
    #allocation3 [shape = 's32[1]{0}', space=sflag, size = 0x4, scoped, tag = 'scoped memory for falcon_attention_forward.1']
    %11 = vsyncpa [#allocation3], 0
    // Predicated region
    $region2: #{falcon_attention_forward.1} parent=1 // pred_check
      _
    $region3: #{falcon_attention_forward.1} parent=1 // pred_check_branch
      %13 = sbr.rel (0) target = $region5
    $region4: #{falcon_attention_forward.1} parent=1 // pred_region
      _
    $region5: #{falcon_attention_forward.1} parent=1 // pred_fallthru
      _
    // Predicated region
    $region6: #{falcon_attention_forward.1} parent=1 // pred_check
      _
    $region7: #{falcon_attention_forward.1} parent=1 // pred_check_branch
      %15 = sbr.rel (0) target = $region9
    $region8: #{falcon_attention_forward.1} parent=1 // pred_region
      _
    $region9: #{falcon_attention_forward.1} parent=1 // pred_fallthru
      _
    // Predicated region
    $region10: #{falcon_attention_forward.1} parent=1 // pred_check
      _
    $region11: #{falcon_attention_forward.1} parent=1 // pred_check_branch
      %17 = sbr.rel (0) target = $region13
    $region12: #{falcon_attention_forward.1} parent=1 // pred_region
      _
    $region13: #{falcon_attention_forward.1} parent=1 // pred_fallthru
      _
    // Predicated region
    $region14: #{falcon_attention_forward.1} parent=1 // pred_check
      _
    $region15: #{falcon_attention_forward.1} parent=1 // pred_check_branch
      %19 = sbr.rel (0) target = $region17
    $region16: #{falcon_attention_forward.1} parent=1 // pred_region
      _
    $region17: #{falcon_attention_forward.1} parent=1 // pred_fallthru
      _
    // Predicated region
    $region18: #{falcon_attention_forward.1} parent=1 // pred_check
      _
    $region19: #{falcon_attention_forward.1} parent=1 // pred_check_branch
      %21 = sbr.rel (0) target = $region21
    $region20: #{falcon_attention_forward.1} parent=1 // pred_region
      _
    $region21: #{falcon_attention_forward.1} parent=1 // pred_fallthru
      _
    // Predicated region
    $region22: #{falcon_attention_forward.1} parent=1 // pred_check
      _
    $region23: #{falcon_attention_forward.1} parent=1 // pred_check_branch
      %23 = sbr.rel (0) target = $region25
    $region24: #{falcon_attention_forward.1} parent=1 // pred_region
      _
    $region25: #{falcon_attention_forward.1} parent=1 // pred_fallthru
      _
    %v24 = vld [vmem:[%s0] sm:$0xff]
    %v25 = vld [vmem:[%s0 + $0x8] sm:$0xff]
    %v26 = vld [vmem:[%s1] sm:$0xff]
    %v27 = vld [vmem:[%s1 + $0x8] sm:$0xff]
    %v28 = vld [vmem:[%s1 + $0x10] sm:$0xff]
    %v29 = vld [vmem:[%s1 + $0x18] sm:$0xff]
    %v30 = vld [vmem:[%s1 + $0x20] sm:$0xff]
    %v31 = vld [vmem:[%s1 + $0x28] sm:$0xff]
    %v32 = vld [vmem:[%s1 + $0x30] sm:$0xff]
    %v33 = vld [vmem:[%s1 + $0x38] sm:$0xff]
    %v34 = vld [vmem:[%s1 + $0x40] sm:$0xff]
    %v35 = vld [vmem:[%s1 + $0x48] sm:$0xff]
    %v36 = vld [vmem:[%s1 + $0x50] sm:$0xff]
    %v37 = vld [vmem:[%s1 + $0x58] sm:$0xff]
    %v38 = vld [vmem:[%s1 + $0x60] sm:$0xff]
    %v39 = vld [vmem:[%s1 + $0x68] sm:$0xff]
    %v40 = vld [vmem:[%s1 + $0x70] sm:$0xff]
    %v41 = vld [vmem:[%s1 + $0x78] sm:$0xff]
    %v42 = vld [vmem:[%s1 + $0x80] sm:$0xff]
    %v43 = vld [vmem:[%s1 + $0x88] sm:$0xff]
    %v44 = vld [vmem:[%s1 + $0x90] sm:$0xff]
    %v45 = vld [vmem:[%s1 + $0x98] sm:$0xff]
    %v46 = vld [vmem:[%s2] sm:$0xff]
    %v47 = vld [vmem:[%s2 + $0x8] sm:$0xff]
    %v48 = vld [vmem:[%s2 + $0x10] sm:$0xff]
    %v49 = vld [vmem:[%s2 + $0x18] sm:$0xff]
    %v50 = vld [vmem:[%s3] sm:$0xff]
    %v51 = vld [vmem:[%s3 + $0x8] sm:$0xff]
    %s52 = scalar_lea.vmem %s3, 16
    %v53 = vld [vmem:[%s52] sm:$0xff]
    %v54 = vld [vmem:[%s52 + $0x8] sm:$0xff]
    %v55 = vld [vmem:[%s4] sm:$0xff]
    %v56 = vld [vmem:[%s4 + $0x8] sm:$0xff]
    %v57 = vld [vmem:[%s4 + $0x10] sm:$0xff]
    %v58 = vld [vmem:[%s4 + $0x18] sm:$0xff]
    %v59 = vld [vmem:[%s4 + $0x20] sm:$0xff]
    %v60 = vld [vmem:[%s4 + $0x28] sm:$0xff]
    %v61 = vld [vmem:[%s4 + $0x30] sm:$0xff]
    %v62 = vld [vmem:[%s4 + $0x38] sm:$0xff]
    %v63 = vld [vmem:[%s5] sm:$0xff]
    %v64 = vld [vmem:[%s5 + $0x8] sm:$0xff]
    %v65 = vld [vmem:[%s5 + $0x10] sm:$0xff]
    %v66 = vld [vmem:[%s5 + $0x18] sm:$0xff]
    %v67 = vld [vmem:[%s5 + $0x20] sm:$0xff]
    %v68 = vld [vmem:[%s5 + $0x28] sm:$0xff]
    %v69 = vld [vmem:[%s5 + $0x30] sm:$0xff]
    %v70 = vld [vmem:[%s5 + $0x38] sm:$0xff]
    %vm71 = vcmask 261120
    %v73 = vsel %vm71, %v24, 0
    %v76 = vsel %vm71, %v25, 0
    %v79 = vsel %vm71, %v26, 0
    %v82 = vsel %vm71, %v27, 0
    %v85 = vsel %vm71, %v28, 0
    %v88 = vsel %vm71, %v29, 0
    %v91 = vsel %vm71, %v30, 0
    %v94 = vsel %vm71, %v31, 0
    %v97 = vsel %vm71, %v32, 0
    %v100 = vsel %vm71, %v33, 0
    %v103 = vsel %vm71, %v34, 0
    %v106 = vsel %vm71, %v35, 0
    %v109 = vsel %vm71, %v36, 0
    %v112 = vsel %vm71, %v37, 0
    %v115 = vsel %vm71, %v38, 0
    %v118 = vsel %vm71, %v39, 0
    %v121 = vsel %vm71, %v40, 0
    %v124 = vsel %vm71, %v41, 0
    %v127 = vsel %vm71, %v42, 0
    %v130 = vsel %vm71, %v43, 0
    %v133 = vsel %vm71, %v44, 0
    %v136 = vsel %vm71, %v45, 0
    %138 = vmatpush.xpose.msra.mxu0 %v124
    %139 = vmatpush.xpose.msra.mxu0 %v121
    %140 = vmatpush.xpose.msra.mxu0 %v118
    %141 = vmatpush.xpose.msra.mxu0 %v115
    %142 = vmatpush.xpose.msra.mxu0 %v112
    %143 = vmatpush.xpose.msra.mxu0 %v109
    %144 = vmatpush.xpose.msra.mxu0 %v106
    %145 = vmatpush.xpose.msra.mxu0 %v103
    %146 = vmatpush.xpose.msra.mxu0 %v100
    %147 = vmatpush.xpose.msra.mxu0 %v97
    %148 = vmatpush.xpose.msra.mxu0 %v94
    %149 = vmatpush.xpose.msra.mxu0 %v91
    %150 = vmatpush.xpose.msra.mxu0 %v88
    %151 = vmatpush.xpose.msra.mxu0 %v85
    %152 = vmatpush.xpose.msra.mxu0 %v82
    %153 = vmatpush.xpose.msra.mxu0 %v79
    %154 = vmatmul.f32.gmra.mxu0 %v73
    %v155 = vpop.f32.mrf.mxu0
    %v156 = vadd.f32 0.0, %v155
    %157 = vmatmul.f32.gmra.mxu0 %v76
    %v158 = vpop.f32.mrf.mxu0
    %v159 = vadd.f32 0.0, %v158
    %160 = vdwg.mxu0
    %161 = vmatpush.xpose.msra.mxu0 0.0
    %162 = vmatpush.xpose.msra.mxu0 0.0
    %163 = vmatpush.xpose.msra.mxu0 0.0
    %164 = vmatpush.xpose.msra.mxu0 0.0
    %165 = vmatpush.xpose.msra.mxu0 0.0
    %166 = vmatpush.xpose.msra.mxu0 0.0
    %167 = vmatpush.xpose.msra.mxu0 0.0
    %168 = vmatpush.xpose.msra.mxu0 0.0
    %169 = vmatpush.xpose.msra.mxu0 0.0
    %170 = vmatpush.xpose.msra.mxu0 0.0
    %171 = vmatpush.xpose.msra.mxu0 0.0
    %172 = vmatpush.xpose.msra.mxu0 0.0
    %173 = vmatpush.xpose.msra.mxu0 %v136
    %174 = vmatpush.xpose.msra.mxu0 %v133
    %175 = vmatpush.xpose.msra.mxu0 %v130
    %176 = vmatpush.xpose.msra.mxu0 %v127
    %177 = vmatmul.f32.gmra.mxu0 %v73
    %v178 = vpop.f32.mrf.mxu0
    %v179 = vadd.f32 0.0, %v178
    %180 = vmatmul.f32.gmra.mxu0 %v76
    %v181 = vpop.f32.mrf.mxu0
    %v182 = vadd.f32 0.0, %v181
    %183 = vdwg.mxu0
    %v184 = vmul.f32 %v156, %v50
    %v185 = vmul.f32 %v159, %v51
    %188 = vrot.lane.b32.xlu0 %v53, 96
    %v189 = vpop.permute.xlu0 %188
    %190 = vrot.lane.b32.xlu0 %v54, 96
    %v191 = vpop.permute.xlu0 %190
    %v194 = vmul.f32 %v156, %v189
    %v195 = vmul.f32 %v159, %v191
    %198 = vrot.lane.b32.xlu0 %v194, 32
    %v199 = vpop.permute.xlu0 %198
    %200 = vrot.lane.b32.xlu0 %v195, 32
    %v201 = vpop.permute.xlu0 %200
    %v204 = vadd.f32 %v184, %v199
    %v205 = vadd.f32 %v185, %v201
    %208 = vrot.lane.b32.xlu0 %v50, 32
    %v209 = vpop.permute.xlu0 %208
    %210 = vrot.lane.b32.xlu0 %v51, 32
    %v211 = vpop.permute.xlu0 %210
    %v214 = vmul.f32 %v156, %v209
    %v215 = vmul.f32 %v159, %v211
    %v216 = vmul.f32 %v179, %v53
    %v217 = vmul.f32 %v182, %v54
    %220 = vrot.lane.b32.xlu0 %v216, 32
    %v221 = vpop.permute.xlu0 %220
    %222 = vrot.lane.b32.xlu0 %v217, 32
    %v223 = vpop.permute.xlu0 %222
    %v226 = vadd.f32 %v214, %v221
    %v227 = vadd.f32 %v215, %v223
    %v228 = vmul.f32 %v204, %v55
    %v229 = vmul.f32 %v205, %v56
    %v230 = vmul.f32 %v204, %v57
    %v231 = vmul.f32 %v205, %v58
    %v232 = vmul.f32 %v204, %v59
    %v233 = vmul.f32 %v205, %v60
    %v234 = vmul.f32 %v204, %v61
    %v235 = vmul.f32 %v205, %v62
    %238 = vrot.lane.b32.xlu0 %v226, 96
    %v239 = vpop.permute.xlu0 %238
    %240 = vrot.lane.b32.xlu0 %v227, 96
    %v241 = vpop.permute.xlu0 %240
    %v243 = vsel %vm71, %v228, 0
    %v246 = vsel %vm71, %v229, 0
    %v249 = vsel %vm71, %v230, 0
    %v252 = vsel %vm71, %v231, 0
    %v255 = vsel %vm71, %v232, 0
    %v258 = vsel %vm71, %v233, 0
    %v261 = vsel %vm71, %v234, 0
    %v264 = vsel %vm71, %v235, 0
    %v266 = vsel %vm71, %v239, 0
    %v268 = vsel %vm71, %v241, 0
    %270 = vmatpush.xpose.msra.mxu0 0.0
    %271 = vmatpush.xpose.msra.mxu0 0.0
    %272 = vmatpush.xpose.msra.mxu0 0.0
    %273 = vmatpush.xpose.msra.mxu0 0.0
    %274 = vmatpush.xpose.msra.mxu0 0.0
    %275 = vmatpush.xpose.msra.mxu0 0.0
    %276 = vmatpush.xpose.msra.mxu0 0.0
    %277 = vmatpush.xpose.msra.mxu0 0.0
    %278 = vmatpush.xpose.msra.mxu0 0.0
    %279 = vmatpush.xpose.msra.mxu0 0.0
    %280 = vmatpush.xpose.msra.mxu0 0.0
    %281 = vmatpush.xpose.msra.mxu0 0.0
    %282 = vmatpush.xpose.msra.mxu0 0.0
    %283 = vmatpush.xpose.msra.mxu0 0.0
    %284 = vmatpush.xpose.msra.mxu0 %v268
    %285 = vmatpush.xpose.msra.mxu0 %v266
    %286 = vmatmul.f32.gmra.mxu0 %v243
    %v287 = vpop.f32.mrf.mxu0
    %v288 = vadd.f32 %v63, %v287
    %289 = vmatmul.f32.gmra.mxu0 %v246
    %v290 = vpop.f32.mrf.mxu0
    %v291 = vadd.f32 %v64, %v290
    %292 = vmatmul.f32.gmra.mxu0 %v249
    %v293 = vpop.f32.mrf.mxu0
    %v294 = vadd.f32 %v65, %v293
    %295 = vmatmul.f32.gmra.mxu0 %v252
    %v296 = vpop.f32.mrf.mxu0
    %v297 = vadd.f32 %v66, %v296
    %298 = vmatmul.f32.gmra.mxu0 %v255
    %v299 = vpop.f32.mrf.mxu0
    %v300 = vadd.f32 %v67, %v299
    %301 = vmatmul.f32.gmra.mxu0 %v258
    %v302 = vpop.f32.mrf.mxu0
    %v303 = vadd.f32 %v68, %v302
    %304 = vmatmul.f32.gmra.mxu0 %v261
    %v305 = vpop.f32.mrf.mxu0
    %v306 = vadd.f32 %v69, %v305
    %307 = vmatmul.f32.gmra.mxu0 %v264
    %v308 = vpop.f32.mrf.mxu0
    %v309 = vadd.f32 %v70, %v308
    %310 = vdwg.mxu0
    %vm311 = vcmask 130048
    %v312 = vsel %vm311, %v288, -inf
    %313 = vmax.xlane.f32.xlu0 %v312
    %v314 = vpop.xlane.xlu0 %313
    %v315 = vsel %vm311, %v291, -inf
    %316 = vmax.xlane.f32.xlu0 %v315
    %v317 = vpop.xlane.xlu0 %316
    %v318 = vsel %vm311, %v294, -inf
    %319 = vmax.xlane.f32.xlu0 %v318
    %v320 = vpop.xlane.xlu0 %319
    %v321 = vsel %vm311, %v297, -inf
    %322 = vmax.xlane.f32.xlu0 %v321
    %v323 = vpop.xlane.xlu0 %322
    %v324 = vsel %vm311, %v300, -inf
    %325 = vmax.xlane.f32.xlu0 %v324
    %v326 = vpop.xlane.xlu0 %325
    %v327 = vsel %vm311, %v303, -inf
    %328 = vmax.xlane.f32.xlu0 %v327
    %v329 = vpop.xlane.xlu0 %328
    %v330 = vsel %vm311, %v306, -inf
    %331 = vmax.xlane.f32.xlu0 %v330
    %v332 = vpop.xlane.xlu0 %331
    %v333 = vsel %vm311, %v309, -inf
    %334 = vmax.xlane.f32.xlu0 %v333
    %v335 = vpop.xlane.xlu0 %334
    %v336 = vsub.f32 %v288, %v314
    %v337 = vsub.f32 %v291, %v317
    %v338 = vsub.f32 %v294, %v320
    %v339 = vsub.f32 %v297, %v323
    %v340 = vsub.f32 %v300, %v326
    %v341 = vsub.f32 %v303, %v329
    %v342 = vsub.f32 %v306, %v332
    %v343 = vsub.f32 %v309, %v335
    %v344 = vmul.f32 %v336, 1.442695
    %v345 = vpow.pop %v344
    %v346 = vmul.f32 %v337, 1.442695
    %v347 = vpow.pop %v346
    %v348 = vmul.f32 %v338, 1.442695
    %v349 = vpow.pop %v348
    %v350 = vmul.f32 %v339, 1.442695
    %v351 = vpow.pop %v350
    %v352 = vmul.f32 %v340, 1.442695
    %v353 = vpow.pop %v352
    %v354 = vmul.f32 %v341, 1.442695
    %v355 = vpow.pop %v354
    %v356 = vmul.f32 %v342, 1.442695
    %v357 = vpow.pop %v356
    %v358 = vmul.f32 %v343, 1.442695
    %v359 = vpow.pop %v358
    %v360 = vsel %vm311, %v345, 0.0
    %361 = vadd.xlane.f32.xlu0 %v360
    %v362 = vpop.xlane.xlu0 %361
    %v363 = vsel %vm311, %v347, 0.0
    %364 = vadd.xlane.f32.xlu0 %v363
    %v365 = vpop.xlane.xlu0 %364
    %v366 = vsel %vm311, %v349, 0.0
    %367 = vadd.xlane.f32.xlu0 %v366
    %v368 = vpop.xlane.xlu0 %367
    %v369 = vsel %vm311, %v351, 0.0
    %370 = vadd.xlane.f32.xlu0 %v369
    %v371 = vpop.xlane.xlu0 %370
    %v372 = vsel %vm311, %v353, 0.0
    %373 = vadd.xlane.f32.xlu0 %v372
    %v374 = vpop.xlane.xlu0 %373
    %v375 = vsel %vm311, %v355, 0.0
    %376 = vadd.xlane.f32.xlu0 %v375
    %v377 = vpop.xlane.xlu0 %376
    %v378 = vsel %vm311, %v357, 0.0
    %379 = vadd.xlane.f32.xlu0 %v378
    %v380 = vpop.xlane.xlu0 %379
    %v381 = vsel %vm311, %v359, 0.0
    %382 = vadd.xlane.f32.xlu0 %v381
    %v383 = vpop.xlane.xlu0 %382
    %v384 = vrcp.pop %v362
    %v385 = vmul.f32 %v362, %v384
    %v386 = vsub.f32 1.0, %v385
    %v387 = vmul.f32 %v384, %v386
    %v388 = vadd.f32 %v384, %v387
    %vm389 = vweird.f32 %v362
    %vm390 = vweird.f32 %v384
    %vm391 = vmor %vm389, %vm390
    %v392 = vsel %vm391, %v384, %v388
    %v393 = vand.u32 2147483647, %v362
    %vm394 = vcmp.eq.f32.partialorder %v393, 8.507059e+37
    %v395 = vand.u32 %v362, 2147483648
    %v396 = vor.u32 1.1754944e-38, %v395
    %v397 = vsel %vm394, %v396, %v392
    %v398 = vmul.f32 %v345, %v397
    %v399 = vrcp.pop %v365
    %v400 = vmul.f32 %v365, %v399
    %v401 = vsub.f32 1.0, %v400
    %v402 = vmul.f32 %v399, %v401
    %v403 = vadd.f32 %v399, %v402
    %vm404 = vweird.f32 %v365
    %vm405 = vweird.f32 %v399
    %vm406 = vmor %vm404, %vm405
    %v407 = vsel %vm406, %v399, %v403
    %v408 = vand.u32 2147483647, %v365
    %vm409 = vcmp.eq.f32.partialorder %v408, 8.507059e+37
    %v410 = vand.u32 %v365, 2147483648
    %v411 = vor.u32 1.1754944e-38, %v410
    %v412 = vsel %vm409, %v411, %v407
    %v413 = vmul.f32 %v347, %v412
    %v414 = vrcp.pop %v368
    %v415 = vmul.f32 %v368, %v414
    %v416 = vsub.f32 1.0, %v415
    %v417 = vmul.f32 %v414, %v416
    %v418 = vadd.f32 %v414, %v417
    %vm419 = vweird.f32 %v368
    %vm420 = vweird.f32 %v414
    %vm421 = vmor %vm419, %vm420
    %v422 = vsel %vm421, %v414, %v418
    %v423 = vand.u32 2147483647, %v368
    %vm424 = vcmp.eq.f32.partialorder %v423, 8.507059e+37
    %v425 = vand.u32 %v368, 2147483648
    %v426 = vor.u32 1.1754944e-38, %v425
    %v427 = vsel %vm424, %v426, %v422
    %v428 = vmul.f32 %v349, %v427
    %v429 = vrcp.pop %v371
    %v430 = vmul.f32 %v371, %v429
    %v431 = vsub.f32 1.0, %v430
    %v432 = vmul.f32 %v429, %v431
    %v433 = vadd.f32 %v429, %v432
    %vm434 = vweird.f32 %v371
    %vm435 = vweird.f32 %v429
    %vm436 = vmor %vm434, %vm435
    %v437 = vsel %vm436, %v429, %v433
    %v438 = vand.u32 2147483647, %v371
    %vm439 = vcmp.eq.f32.partialorder %v438, 8.507059e+37
    %v440 = vand.u32 %v371, 2147483648
    %v441 = vor.u32 1.1754944e-38, %v440
    %v442 = vsel %vm439, %v441, %v437
    %v443 = vmul.f32 %v351, %v442
    %v444 = vrcp.pop %v374
    %v445 = vmul.f32 %v374, %v444
    %v446 = vsub.f32 1.0, %v445
    %v447 = vmul.f32 %v444, %v446
    %v448 = vadd.f32 %v444, %v447
    %vm449 = vweird.f32 %v374
    %vm450 = vweird.f32 %v444
    %vm451 = vmor %vm449, %vm450
    %v452 = vsel %vm451, %v444, %v448
    %v453 = vand.u32 2147483647, %v374
    %vm454 = vcmp.eq.f32.partialorder %v453, 8.507059e+37
    %v455 = vand.u32 %v374, 2147483648
    %v456 = vor.u32 1.1754944e-38, %v455
    %v457 = vsel %vm454, %v456, %v452
    %v458 = vmul.f32 %v353, %v457
    %v459 = vrcp.pop %v377
    %v460 = vmul.f32 %v377, %v459
    %v461 = vsub.f32 1.0, %v460
    %v462 = vmul.f32 %v459, %v461
    %v463 = vadd.f32 %v459, %v462
    %vm464 = vweird.f32 %v377
    %vm465 = vweird.f32 %v459
    %vm466 = vmor %vm464, %vm465
    %v467 = vsel %vm466, %v459, %v463
    %v468 = vand.u32 2147483647, %v377
    %vm469 = vcmp.eq.f32.partialorder %v468, 8.507059e+37
    %v470 = vand.u32 %v377, 2147483648
    %v471 = vor.u32 1.1754944e-38, %v470
    %v472 = vsel %vm469, %v471, %v467
    %v473 = vmul.f32 %v355, %v472
    %v474 = vrcp.pop %v380
    %v475 = vmul.f32 %v380, %v474
    %v476 = vsub.f32 1.0, %v475
    %v477 = vmul.f32 %v474, %v476
    %v478 = vadd.f32 %v474, %v477
    %vm479 = vweird.f32 %v380
    %vm480 = vweird.f32 %v474
    %vm481 = vmor %vm479, %vm480
    %v482 = vsel %vm481, %v474, %v478
    %v483 = vand.u32 2147483647, %v380
    %vm484 = vcmp.eq.f32.partialorder %v483, 8.507059e+37
    %v485 = vand.u32 %v380, 2147483648
    %v486 = vor.u32 1.1754944e-38, %v485
    %v487 = vsel %vm484, %v486, %v482
    %v488 = vmul.f32 %v357, %v487
    %v489 = vrcp.pop %v383
    %v490 = vmul.f32 %v383, %v489
    %v491 = vsub.f32 1.0, %v490
    %v492 = vmul.f32 %v489, %v491
    %v493 = vadd.f32 %v489, %v492
    %vm494 = vweird.f32 %v383
    %vm495 = vweird.f32 %v489
    %vm496 = vmor %vm494, %vm495
    %v497 = vsel %vm496, %v489, %v493
    %v498 = vand.u32 2147483647, %v383
    %vm499 = vcmp.eq.f32.partialorder %v498, 8.507059e+37
    %v500 = vand.u32 %v383, 2147483648
    %v501 = vor.u32 1.1754944e-38, %v500
    %v502 = vsel %vm499, %v501, %v497
    %v503 = vmul.f32 %v359, %v502
    %506 = vrot.lane.b32.xlu0 %v156, 64
    %v507 = vpop.permute.xlu0 %506
    %508 = vrot.lane.b32.xlu0 %v159, 64
    %v509 = vpop.permute.xlu0 %508
    %v513 = vsel %vm311, %v398, 0
    %v516 = vsel %vm311, %v413, 0
    %v519 = vsel %vm311, %v428, 0
    %v522 = vsel %vm311, %v443, 0
    %v525 = vsel %vm311, %v458, 0
    %v528 = vsel %vm311, %v473, 0
    %v531 = vsel %vm311, %v488, 0
    %v534 = vsel %vm311, %v503, 0
    %536 = vmatpush.msra.mxu0 0.0
    %537 = vmatpush.msra.mxu0 0.0
    %538 = vmatpush.msra.mxu0 0.0
    %539 = vmatpush.msra.mxu0 0.0
    %540 = vmatpush.msra.mxu0 0.0
    %541 = vmatpush.msra.mxu0 0.0
    %542 = vmatpush.msra.mxu0 0.0
    %543 = vmatpush.msra.mxu0 0.0
    %544 = vmatpush.msra.mxu0 0.0
    %545 = vmatpush.msra.mxu0 0.0
    %546 = vmatpush.msra.mxu0 0.0
    %547 = vmatpush.msra.mxu0 0.0
    %548 = vmatpush.msra.mxu0 0.0
    %549 = vmatpush.msra.mxu0 0.0
    %550 = vmatpush.msra.mxu0 %v509
    %551 = vmatpush.msra.mxu0 %v507
    %552 = vmatmul.f32.gmra.mxu0 %v513
    %v553 = vpop.f32.mrf.mxu0
    %v554 = vadd.f32 0.0, %v553
    %555 = vmatmul.f32.gmra.mxu0 %v516
    %v556 = vpop.f32.mrf.mxu0
    %v557 = vadd.f32 0.0, %v556
    %558 = vmatmul.f32.gmra.mxu0 %v519
    %v559 = vpop.f32.mrf.mxu0
    %v560 = vadd.f32 0.0, %v559
    %561 = vmatmul.f32.gmra.mxu0 %v522
    %v562 = vpop.f32.mrf.mxu0
    %v563 = vadd.f32 0.0, %v562
    %564 = vmatmul.f32.gmra.mxu0 %v525
    %v565 = vpop.f32.mrf.mxu0
    %v566 = vadd.f32 0.0, %v565
    %567 = vmatmul.f32.gmra.mxu0 %v528
    %v568 = vpop.f32.mrf.mxu0
    %v569 = vadd.f32 0.0, %v568
    %570 = vmatmul.f32.gmra.mxu0 %v531
    %v571 = vpop.f32.mrf.mxu0
    %v572 = vadd.f32 0.0, %v571
    %573 = vmatmul.f32.gmra.mxu0 %v534
    %v574 = vpop.f32.mrf.mxu0
    %v575 = vadd.f32 0.0, %v574
    %576 = vdwg.mxu0
    %v577 = vmul.f32 %v554, %v55
    %v578 = vmul.f32 %v557, %v56
    %v579 = vmul.f32 %v560, %v57
    %v580 = vmul.f32 %v563, %v58
    %v581 = vmul.f32 %v566, %v59
    %v582 = vmul.f32 %v569, %v60
    %v583 = vmul.f32 %v572, %v61
    %v584 = vmul.f32 %v575, %v62
    %v585 = vadd.f32 %v577, %v579
    %v586 = vadd.f32 %v578, %v580
    %v587 = vadd.f32 %v585, %v581
    %v588 = vadd.f32 %v586, %v582
    %v589 = vadd.f32 %v587, %v583
    %v590 = vadd.f32 %v588, %v584
    %v592 = vsel %vm71, %v589, 0
    %v595 = vsel %vm71, %v590, 0
    %v598 = vsel %vm71, %v46, 0
    %v601 = vsel %vm71, %v47, 0
    %v604 = vsel %vm71, %v48, 0
    %v607 = vsel %vm71, %v49, 0
    %609 = vmatpush.xpose.msra.mxu0 0.0
    %610 = vmatpush.xpose.msra.mxu0 0.0
    %611 = vmatpush.xpose.msra.mxu0 0.0
    %612 = vmatpush.xpose.msra.mxu0 0.0
    %613 = vmatpush.xpose.msra.mxu0 0.0
    %614 = vmatpush.xpose.msra.mxu0 0.0
    %615 = vmatpush.xpose.msra.mxu0 0.0
    %616 = vmatpush.xpose.msra.mxu0 0.0
    %617 = vmatpush.xpose.msra.mxu0 0.0
    %618 = vmatpush.xpose.msra.mxu0 0.0
    %619 = vmatpush.xpose.msra.mxu0 0.0
    %620 = vmatpush.xpose.msra.mxu0 0.0
    %621 = vmatpush.xpose.msra.mxu0 %v607
    %622 = vmatpush.xpose.msra.mxu0 %v604
    %623 = vmatpush.xpose.msra.mxu0 %v601
    %624 = vmatpush.xpose.msra.mxu0 %v598
    %625 = vmatmul.f32.gmra.mxu0 %v592
    %v626 = vpop.f32.mrf.mxu0
    %v627 = vadd.f32 0.0, %v626
    %628 = vmatmul.f32.gmra.mxu0 %v595
    %v629 = vpop.f32.mrf.mxu0
    %v630 = vadd.f32 0.0, %v629
    %631 = vdwg.mxu0
    %632 = vst.msk [vmem:[#allocation2] sm:$0xff] %vm71, %v627
    %633 = vst.msk [vmem:[#allocation2 + $0x8] sm:$0xff] %vm71, %v630
    // Predicated region
    $region26: #{falcon_attention_forward.1} parent=1 // pred_check
      _
    $region27: #{falcon_attention_forward.1} parent=1 // pred_check_branch
      %635 = sbr.rel (0) target = $region29
    $region28: #{falcon_attention_forward.1} parent=1 // pred_region
      %637 = vsyncadd [#allocation3], 0
      %s638 = sshll.u32 [#allocation2], 4
      %s639 = int_to_ptr.vmem [resolvable:$true] %s638
      %s640 = sshll.u32 %s6, 4
      %s641 = int_to_ptr.hbm [resolvable:$true] %s640
      %646 = dma.vmem_to_hbm [thread:$0]  %s639, 256, %s641, [#allocation3], 128, 128, 8
    $region29: #{falcon_attention_forward.1} parent=1 // pred_fallthru
      _
    // Predicated region
    $region30: #{falcon_attention_forward.1} parent=1 // pred_check
      _
    $region31: #{falcon_attention_forward.1} parent=1 // pred_check_branch
      %648 = sbr.rel (0) target = $region33
    $region32: #{falcon_attention_forward.1} parent=1 // pred_region
      %650 = dma.done [#allocation3], 256
    $region33: #{falcon_attention_forward.1} parent=1 // pred_fallthru
      _
    %651 = vsyncpa [#allocation3], 1

</llo_original>
